<compile_context>
chip_gen: v5e
topology: v5e:2x2
jax: 0.10.0
libtpu: 0.0.40
codegen_flags: <defaults>
</compile_context>

<pallas_src>
import math
from functools import partial

import jax
import jax.numpy as jnp
from jax.experimental import pallas as pl
from jax.experimental.pallas import tpu as pltpu


def _layer_norm(y, w, b, eps=1e-5):
    mu = jnp.mean(y, axis=-1, keepdims=True)
    var = jnp.mean((y - mu) ** 2, axis=-1, keepdims=True)
    return (y - mu) * jax.lax.rsqrt(var + eps) * w + b


def encoder_layer_kernel(
    x_ref, mask_ref,
    wqkv_ref, wo_ref,
    ln1w_ref, ln1b_ref,
    w1_ref, w2_ref,
    ln2w_ref, ln2b_ref,
    out_ref, attn_ref,
    *, B, S, n_heads, d_k, d_v,
):
    H = n_heads
    BS = B * S

    x = x_ref[...]                                   # (B*S, D)

    # --- fused QKV projection: one MXU matmul instead of three -------------
    qkv = jnp.dot(x, wqkv_ref[...],
                  preferred_element_type=jnp.float32)        # (B*S, H*(2*dk+dv))

    k_off = H * d_k
    v_off = 2 * H * d_k

    def split_heads(off, d):
        # (B*S, H*d) columns -> (B*H, S, d), batch-major / head-minor order.
        # Uses only static lane slices, tile-aligned leading reshapes and a
        # leading-dim stack (cheap, well-supported lowering).
        heads = [qkv[:, off + h * d: off + (h + 1) * d].reshape(B, S, d)
                 for h in range(H)]
        return jnp.stack(heads, axis=1).reshape(B * H, S, d)

    scale = 1.0 / math.sqrt(d_k)
    qh = split_heads(0, d_k) * scale                 # (B*H, S, dk), scale folded once
    kh = split_heads(k_off, d_k)                     # (B*H, S, dk)
    vh = split_heads(v_off, d_v)                     # (B*H, S, dv)

    # --- batched scaled-dot-product attention --------------------------------
    scores = jnp.einsum("bqd,bkd->bqk", qh, kh,
                        preferred_element_type=jnp.float32)  # (B*H, S, S)

    # masked_fill_(-10000) semantics, applied once to the batched scores.
    mask = mask_ref[...]                             # (B, S, S); >0.5 => mask out
    mask_bh = jnp.stack([mask] * H, axis=1).reshape(B * H, S, S)
    scores = jnp.where(mask_bh > 0.5, -10000.0, scores)

    m = jnp.max(scores, axis=-1, keepdims=True)
    e = jnp.exp(scores - m)
    denom = jnp.sum(e, axis=-1, keepdims=True)
    attn = e * pl.reciprocal(denom, approx=True)     # softmax(dim=-1), divide on EUP

    attn_ref[...] = attn.reshape(B, H, S, S)

    ctx = jnp.einsum("bqk,bkd->bqd", attn, vh,
                     preferred_element_type=jnp.float32)     # (B*H, S, dv)
    ctx4 = ctx.reshape(B, H, S, d_v)
    context = jnp.concatenate(
        [ctx4[:, h].reshape(BS, d_v) for h in range(H)], axis=-1)  # (B*S, H*dv)

    attn_out = jnp.dot(context, wo_ref[...],
                       preferred_element_type=jnp.float32)   # (B*S, D)
    h1 = _layer_norm(attn_out + x, ln1w_ref[...], ln1b_ref[...])

    # --- position-wise feed-forward -------------------------------------------
    ff = jnp.dot(h1, w1_ref[...], preferred_element_type=jnp.float32)
    ff = jnp.maximum(ff, 0.0)
    ff = jnp.dot(ff, w2_ref[...], preferred_element_type=jnp.float32)
    out_ref[...] = _layer_norm(ff + h1, ln2w_ref[...], ln2b_ref[...])


@partial(jax.jit, static_argnames=("n_heads", "d_k", "d_v"))
def encoder_layer(x, mask, params, *, n_heads, d_k, d_v):
    B, S, D = x.shape

    # Fuse the three projection weights into one (D, 2*H*dk + H*dv) matrix.
    wqkv = jnp.concatenate([params["wq"], params["wk"], params["wv"]], axis=1)

    kernel = partial(encoder_layer_kernel, B=B, S=S,
                     n_heads=n_heads, d_k=d_k, d_v=d_v)

    vmem = lambda: pl.BlockSpec(memory_space=pltpu.MemorySpace.VMEM)

    out2d, attn = pl.pallas_call(
        kernel,
        out_shape=(
            jax.ShapeDtypeStruct((B * S, D), jnp.float32),
            jax.ShapeDtypeStruct((B, n_heads, S, S), jnp.float32),
        ),
        in_specs=[vmem() for _ in range(10)],
        out_specs=(vmem(), vmem()),
    )(
        x.reshape(B * S, D), mask,
        wqkv, params["wo"],
        params["ln1_w"], params["ln1_b"],
        params["w1"], params["w2"],
        params["ln2_w"], params["ln2_b"],
    )
    return out2d.reshape(B, S, D), attn


def encoder_layer_ref(x, mask, params, *, n_heads, d_k, d_v):
    """Pure-JAX reference mirroring the PyTorch forward."""
    B, S, D = x.shape
    q = (x @ params["wq"]).reshape(B, S, n_heads, d_k).transpose(0, 2, 1, 3)
    k = (x @ params["wk"]).reshape(B, S, n_heads, d_k).transpose(0, 2, 1, 3)
    v = (x @ params["wv"]).reshape(B, S, n_heads, d_v).transpose(0, 2, 1, 3)
    scores = jnp.einsum("bhqd,bhkd->bhqk", q, k) / math.sqrt(d_k)
    scores = jnp.where(mask[:, None] > 0.5, -10000.0, scores)
    attn = jax.nn.softmax(scores, axis=-1)
    ctx = jnp.einsum("bhqk,bhkd->bhqd", attn, v).transpose(0, 2, 1, 3).reshape(B, S, -1)
    attn_out = ctx @ params["wo"]
    h1 = _layer_norm(attn_out + x, params["ln1_w"][0], params["ln1_b"][0])
    ff = jnp.maximum(h1 @ params["w1"], 0.0) @ params["w2"]
    out = _layer_norm(ff + h1, params["ln2_w"][0], params["ln2_b"][0])
    return out, attn


if __name__ == "__main__":
    # Small shapes consistent with the module's forward.
    B, S = 2, 8
    d_model, n_heads, d_k, d_v, d_ff = 32, 4, 8, 8, 64

    key = jax.random.PRNGKey(0)
    keys = jax.random.split(key, 8)

    def init(k, shape, fan_in):
        bound = 1.0 / math.sqrt(fan_in)
        return jax.random.uniform(k, shape, jnp.float32, -bound, bound)

    params = {
        "wq": init(keys[0], (d_model, n_heads * d_k), d_model),
        "wk": init(keys[1], (d_model, n_heads * d_k), d_model),
        "wv": init(keys[2], (d_model, n_heads * d_v), d_model),
        "wo": init(keys[3], (n_heads * d_v, d_model), n_heads * d_v),
        "w1": init(keys[4], (d_model, d_ff), d_model),
        "w2": init(keys[5], (d_ff, d_model), d_ff),
        "ln1_w": jnp.ones((1, d_model), jnp.float32),
        "ln1_b": jnp.zeros((1, d_model), jnp.float32),
        "ln2_w": jnp.ones((1, d_model), jnp.float32),
        "ln2_b": jnp.zeros((1, d_model), jnp.float32),
    }

    x = jax.random.normal(keys[6], (B, S, d_model), jnp.float32)
    # Boolean self-attention mask (e.g. padding mask), passed as 0/1 float.
    mask = (jax.random.uniform(keys[7], (B, S, S)) < 0.2).astype(jnp.float32)

    out, attn = encoder_layer(x, mask, params, n_heads=n_heads, d_k=d_k, d_v=d_v)
    out, attn = jax.block_until_ready((out, attn))

    out_ref, attn_ref = encoder_layer_ref(x, mask, params,
                                          n_heads=n_heads, d_k=d_k, d_v=d_v)
    assert out.shape == (B, S, d_model) and attn.shape == (B, n_heads, S, S)
    # Slightly relaxed tolerance: softmax uses the EUP approximate reciprocal.
    assert jnp.allclose(out, out_ref, atol=5e-3, rtol=5e-3)
    assert jnp.allclose(attn, attn_ref, atol=5e-3, rtol=5e-3)

    print("KERNEL_OK")
</pallas_src>

<mosaic_0001>
module attributes {stable_mosaic.version = 11 : i64} {
  func.func @encoder_layer_kernel(%arg0: memref<16x32xf32, #tpu.memory_space<vmem>>, %arg1: memref<2x8x8xf32, #tpu.memory_space<vmem>>, %arg2: memref<32x96xf32, #tpu.memory_space<vmem>>, %arg3: memref<32x32xf32, #tpu.memory_space<vmem>>, %arg4: memref<1x32xf32, #tpu.memory_space<vmem>>, %arg5: memref<1x32xf32, #tpu.memory_space<vmem>>, %arg6: memref<32x64xf32, #tpu.memory_space<vmem>>, %arg7: memref<64x32xf32, #tpu.memory_space<vmem>>, %arg8: memref<1x32xf32, #tpu.memory_space<vmem>>, %arg9: memref<1x32xf32, #tpu.memory_space<vmem>>, %arg10: memref<16x32xf32, #tpu.memory_space<vmem>>, %arg11: memref<2x4x8x8xf32, #tpu.memory_space<vmem>>) attributes {dimension_semantics = [], scalar_prefetch = 0 : i64, scratch_operands = 0 : i64, tpu.core_type = #tpu.core_type<tc>} {
    %c0 = arith.constant 0 : index
    %c0_0 = arith.constant 0 : index
    %0 = vector.load %arg0[%c0, %c0_0] : memref<16x32xf32, #tpu.memory_space<vmem>>, vector<16x32xf32>
    %c0_1 = arith.constant 0 : index
    %c0_2 = arith.constant 0 : index
    %1 = vector.load %arg2[%c0_1, %c0_2] : memref<32x96xf32, #tpu.memory_space<vmem>>, vector<32x96xf32>
    %cst = arith.constant dense<0.000000e+00> : vector<16x96xf32>
    %2 = tpu.matmul %0, %1, %cst {dimension_numbers = #tpu.dot_dimension_numbers<[1], [0], [0], [1], [0, 0, 1, 1], [], []>} : vector<16x32xf32>, vector<32x96xf32>, vector<16x96xf32> -> vector<16x96xf32>
    %3 = vector.extract_strided_slice %2 {offsets = [0, 0], sizes = [16, 8], strides = [1, 1]} : vector<16x96xf32> to vector<16x8xf32>
    %4 = vector.shape_cast %3 : vector<16x8xf32> to vector<2x8x8xf32>
    %5 = vector.extract_strided_slice %2 {offsets = [0, 8], sizes = [16, 8], strides = [1, 1]} : vector<16x96xf32> to vector<16x8xf32>
    %6 = vector.shape_cast %5 : vector<16x8xf32> to vector<2x8x8xf32>
    %7 = vector.extract_strided_slice %2 {offsets = [0, 16], sizes = [16, 8], strides = [1, 1]} : vector<16x96xf32> to vector<16x8xf32>
    %8 = vector.shape_cast %7 : vector<16x8xf32> to vector<2x8x8xf32>
    %9 = vector.extract_strided_slice %2 {offsets = [0, 24], sizes = [16, 8], strides = [1, 1]} : vector<16x96xf32> to vector<16x8xf32>
    %10 = vector.shape_cast %9 : vector<16x8xf32> to vector<2x8x8xf32>
    %11 = vector.shape_cast %4 : vector<2x8x8xf32> to vector<2x1x8x8xf32>
    %12 = vector.shape_cast %6 : vector<2x8x8xf32> to vector<2x1x8x8xf32>
    %13 = vector.shape_cast %8 : vector<2x8x8xf32> to vector<2x1x8x8xf32>
    %14 = vector.shape_cast %10 : vector<2x8x8xf32> to vector<2x1x8x8xf32>
    %15 = tpu.concatenate %11, %12, %13, %14 in 1 : vector<2x1x8x8xf32>, vector<2x1x8x8xf32>, vector<2x1x8x8xf32>, vector<2x1x8x8xf32> -> vector<2x4x8x8xf32>
    %16 = vector.shape_cast %15 : vector<2x4x8x8xf32> to vector<8x8x8xf32>
    %cst_3 = arith.constant 0.353553385 : f32
    %17 = vector.broadcast %cst_3 : f32 to vector<8x8x8xf32>
    %18 = arith.mulf %16, %17 : vector<8x8x8xf32>
    %19 = vector.extract_strided_slice %2 {offsets = [0, 32], sizes = [16, 8], strides = [1, 1]} : vector<16x96xf32> to vector<16x8xf32>
    %20 = vector.shape_cast %19 : vector<16x8xf32> to vector<2x8x8xf32>
    %21 = vector.extract_strided_slice %2 {offsets = [0, 40], sizes = [16, 8], strides = [1, 1]} : vector<16x96xf32> to vector<16x8xf32>
    %22 = vector.shape_cast %21 : vector<16x8xf32> to vector<2x8x8xf32>
    %23 = vector.extract_strided_slice %2 {offsets = [0, 48], sizes = [16, 8], strides = [1, 1]} : vector<16x96xf32> to vector<16x8xf32>
    %24 = vector.shape_cast %23 : vector<16x8xf32> to vector<2x8x8xf32>
    %25 = vector.extract_strided_slice %2 {offsets = [0, 56], sizes = [16, 8], strides = [1, 1]} : vector<16x96xf32> to vector<16x8xf32>
    %26 = vector.shape_cast %25 : vector<16x8xf32> to vector<2x8x8xf32>
    %27 = vector.shape_cast %20 : vector<2x8x8xf32> to vector<2x1x8x8xf32>
    %28 = vector.shape_cast %22 : vector<2x8x8xf32> to vector<2x1x8x8xf32>
    %29 = vector.shape_cast %24 : vector<2x8x8xf32> to vector<2x1x8x8xf32>
    %30 = vector.shape_cast %26 : vector<2x8x8xf32> to vector<2x1x8x8xf32>
    %31 = tpu.concatenate %27, %28, %29, %30 in 1 : vector<2x1x8x8xf32>, vector<2x1x8x8xf32>, vector<2x1x8x8xf32>, vector<2x1x8x8xf32> -> vector<2x4x8x8xf32>
    %32 = vector.shape_cast %31 : vector<2x4x8x8xf32> to vector<8x8x8xf32>
    %33 = vector.extract_strided_slice %2 {offsets = [0, 64], sizes = [16, 8], strides = [1, 1]} : vector<16x96xf32> to vector<16x8xf32>
    %34 = vector.shape_cast %33 : vector<16x8xf32> to vector<2x8x8xf32>
    %35 = vector.extract_strided_slice %2 {offsets = [0, 72], sizes = [16, 8], strides = [1, 1]} : vector<16x96xf32> to vector<16x8xf32>
    %36 = vector.shape_cast %35 : vector<16x8xf32> to vector<2x8x8xf32>
    %37 = vector.extract_strided_slice %2 {offsets = [0, 80], sizes = [16, 8], strides = [1, 1]} : vector<16x96xf32> to vector<16x8xf32>
    %38 = vector.shape_cast %37 : vector<16x8xf32> to vector<2x8x8xf32>
    %39 = vector.extract_strided_slice %2 {offsets = [0, 88], sizes = [16, 8], strides = [1, 1]} : vector<16x96xf32> to vector<16x8xf32>
    %40 = vector.shape_cast %39 : vector<16x8xf32> to vector<2x8x8xf32>
    %41 = vector.shape_cast %34 : vector<2x8x8xf32> to vector<2x1x8x8xf32>
    %42 = vector.shape_cast %36 : vector<2x8x8xf32> to vector<2x1x8x8xf32>
    %43 = vector.shape_cast %38 : vector<2x8x8xf32> to vector<2x1x8x8xf32>
    %44 = vector.shape_cast %40 : vector<2x8x8xf32> to vector<2x1x8x8xf32>
    %45 = tpu.concatenate %41, %42, %43, %44 in 1 : vector<2x1x8x8xf32>, vector<2x1x8x8xf32>, vector<2x1x8x8xf32>, vector<2x1x8x8xf32> -> vector<2x4x8x8xf32>
    %46 = vector.shape_cast %45 : vector<2x4x8x8xf32> to vector<8x8x8xf32>
    "tpu.trace_start"() <{level = 10 : i32, message = "bqd,bkd->bqk"}> : () -> ()
    %cst_4 = arith.constant dense<0.000000e+00> : vector<8x8x8xf32>
    %47 = tpu.matmul %18, %32, %cst_4 {dimension_numbers = #tpu.dot_dimension_numbers<[2], [2], [1], [1], [0, 0, 0, 1, 1, 1], [0], [0]>} : vector<8x8x8xf32>, vector<8x8x8xf32>, vector<8x8x8xf32> -> vector<8x8x8xf32>
    "tpu.trace_stop"() : () -> ()
    %c0_5 = arith.constant 0 : index
    %c0_6 = arith.constant 0 : index
    %c0_7 = arith.constant 0 : index
    %48 = vector.load %arg1[%c0_5, %c0_6, %c0_7] : memref<2x8x8xf32, #tpu.memory_space<vmem>>, vector<2x8x8xf32>
    %49 = vector.shape_cast %48 : vector<2x8x8xf32> to vector<2x1x8x8xf32>
    %50 = vector.shape_cast %48 : vector<2x8x8xf32> to vector<2x1x8x8xf32>
    %51 = vector.shape_cast %48 : vector<2x8x8xf32> to vector<2x1x8x8xf32>
    %52 = vector.shape_cast %48 : vector<2x8x8xf32> to vector<2x1x8x8xf32>
    %53 = tpu.concatenate %49, %50, %51, %52 in 1 : vector<2x1x8x8xf32>, vector<2x1x8x8xf32>, vector<2x1x8x8xf32>, vector<2x1x8x8xf32> -> vector<2x4x8x8xf32>
    %54 = vector.shape_cast %53 : vector<2x4x8x8xf32> to vector<8x8x8xf32>
    %cst_8 = arith.constant 5.000000e-01 : f32
    %55 = vector.broadcast %cst_8 : f32 to vector<8x8x8xf32>
    %56 = arith.cmpf ogt, %54, %55 : vector<8x8x8xf32>
    %cst_9 = arith.constant -1.000000e+04 : f32
    %57 = vector.broadcast %cst_9 : f32 to vector<8x8x8xf32>
    %58 = arith.select %56, %57, %47 : vector<8x8x8xi1>, vector<8x8x8xf32>
    %cst_10 = arith.constant dense<0xFF800000> : vector<8x8xf32>
    %59 = vector.multi_reduction <maximumf>, %58, %cst_10 [2] : vector<8x8x8xf32> to vector<8x8xf32>
    %60 = vector.shape_cast %59 : vector<8x8xf32> to vector<8x8x1xf32>
    %61 = vector.broadcast %60 : vector<8x8x1xf32> to vector<8x8x8xf32>
    %62 = arith.subf %58, %61 : vector<8x8x8xf32>
    %63 = math.exp %62 : vector<8x8x8xf32>
    %cst_11 = arith.constant dense<0.000000e+00> : vector<8x8xf32>
    %64 = vector.multi_reduction <add>, %63, %cst_11 [2] : vector<8x8x8xf32> to vector<8x8xf32>
    %65 = vector.shape_cast %64 : vector<8x8xf32> to vector<8x8x1xf32>
    %66 = tpu.reciprocal %65 {approx = true} : vector<8x8x1xf32> -> vector<8x8x1xf32>
    %67 = vector.broadcast %66 : vector<8x8x1xf32> to vector<8x8x8xf32>
    %68 = arith.mulf %63, %67 : vector<8x8x8xf32>
    %69 = vector.shape_cast %68 : vector<8x8x8xf32> to vector<2x4x8x8xf32>
    %c0_12 = arith.constant 0 : index
    %c0_13 = arith.constant 0 : index
    %c0_14 = arith.constant 0 : index
    %c0_15 = arith.constant 0 : index
    %70 = vector.load %arg11[%c0_12, %c0_13, %c0_14, %c0_15] : memref<2x4x8x8xf32, #tpu.memory_space<vmem>>, vector<2x4x8x8xf32>
    tpu.vector_store %arg11[%c0_12, %c0_13, %c0_14, %c0_15], %69 {strides = array<i32>} : memref<2x4x8x8xf32, #tpu.memory_space<vmem>>, vector<2x4x8x8xf32>,
    "tpu.trace_start"() <{level = 10 : i32, message = "bqk,bkd->bqd"}> : () -> ()
    %cst_16 = arith.constant dense<0.000000e+00> : vector<8x8x8xf32>
    %71 = tpu.matmul %68, %46, %cst_16 {dimension_numbers = #tpu.dot_dimension_numbers<[2], [1], [1], [2], [0, 0, 0, 1, 1, 2], [0], [0]>} : vector<8x8x8xf32>, vector<8x8x8xf32>, vector<8x8x8xf32> -> vector<8x8x8xf32>
    "tpu.trace_stop"() : () -> ()
    %72 = vector.shape_cast %71 : vector<8x8x8xf32> to vector<2x4x8x8xf32>
    %73 = vector.extract_strided_slice %72 {offsets = [0, 0, 0, 0], sizes = [2, 1, 8, 8], strides = [1, 1, 1, 1]} : vector<2x4x8x8xf32> to vector<2x1x8x8xf32>
    %74 = vector.shape_cast %73 : vector<2x1x8x8xf32> to vector<2x8x8xf32>
    %75 = vector.shape_cast %74 : vector<2x8x8xf32> to vector<16x8xf32>
    %76 = vector.extract_strided_slice %72 {offsets = [0, 1, 0, 0], sizes = [2, 1, 8, 8], strides = [1, 1, 1, 1]} : vector<2x4x8x8xf32> to vector<2x1x8x8xf32>
    %77 = vector.shape_cast %76 : vector<2x1x8x8xf32> to vector<2x8x8xf32>
    %78 = vector.shape_cast %77 : vector<2x8x8xf32> to vector<16x8xf32>
    %79 = vector.extract_strided_slice %72 {offsets = [0, 2, 0, 0], sizes = [2, 1, 8, 8], strides = [1, 1, 1, 1]} : vector<2x4x8x8xf32> to vector<2x1x8x8xf32>
    %80 = vector.shape_cast %79 : vector<2x1x8x8xf32> to vector<2x8x8xf32>
    %81 = vector.shape_cast %80 : vector<2x8x8xf32> to vector<16x8xf32>
    %82 = vector.extract_strided_slice %72 {offsets = [0, 3, 0, 0], sizes = [2, 1, 8, 8], strides = [1, 1, 1, 1]} : vector<2x4x8x8xf32> to vector<2x1x8x8xf32>
    %83 = vector.shape_cast %82 : vector<2x1x8x8xf32> to vector<2x8x8xf32>
    %84 = vector.shape_cast %83 : vector<2x8x8xf32> to vector<16x8xf32>
    %85 = tpu.concatenate %75, %78, %81, %84 in 1 : vector<16x8xf32>, vector<16x8xf32>, vector<16x8xf32>, vector<16x8xf32> -> vector<16x32xf32>
    %c0_17 = arith.constant 0 : index
    %c0_18 = arith.constant 0 : index
    %86 = vector.load %arg3[%c0_17, %c0_18] : memref<32x32xf32, #tpu.memory_space<vmem>>, vector<32x32xf32>
    %cst_19 = arith.constant dense<0.000000e+00> : vector<16x32xf32>
    %87 = tpu.matmul %85, %86, %cst_19 {dimension_numbers = #tpu.dot_dimension_numbers<[1], [0], [0], [1], [0, 0, 1, 1], [], []>} : vector<16x32xf32>, vector<32x32xf32>, vector<16x32xf32> -> vector<16x32xf32>
    %88 = arith.addf %87, %0 : vector<16x32xf32>
    %c0_20 = arith.constant 0 : index
    %c0_21 = arith.constant 0 : index
    %89 = vector.load %arg4[%c0_20, %c0_21] : memref<1x32xf32, #tpu.memory_space<vmem>>, vector<1x32xf32>
    %c0_22 = arith.constant 0 : index
    %c0_23 = arith.constant 0 : index
    %90 = vector.load %arg5[%c0_22, %c0_23] : memref<1x32xf32, #tpu.memory_space<vmem>>, vector<1x32xf32>
    %cst_24 = arith.constant dense<0.000000e+00> : vector<16xf32>
    %91 = vector.multi_reduction <add>, %88, %cst_24 [1] : vector<16x32xf32> to vector<16xf32>
    %92 = vector.shape_cast %91 : vector<16xf32> to vector<16x1xf32>
    %cst_25 = arith.constant 3.200000e+01 : f32
    %93 = vector.broadcast %cst_25 : f32 to vector<16x1xf32>
    %94 = arith.divf %92, %93 : vector<16x1xf32>
    %95 = vector.broadcast %94 : vector<16x1xf32> to vector<16x32xf32>
    %96 = arith.subf %88, %95 : vector<16x32xf32>
    %97 = arith.mulf %96, %96 : vector<16x32xf32>
    %cst_26 = arith.constant dense<0.000000e+00> : vector<16xf32>
    %98 = vector.multi_reduction <add>, %97, %cst_26 [1] : vector<16x32xf32> to vector<16xf32>
    %99 = vector.shape_cast %98 : vector<16xf32> to vector<16x1xf32>
    %cst_27 = arith.constant 3.200000e+01 : f32
    %100 = vector.broadcast %cst_27 : f32 to vector<16x1xf32>
    %101 = arith.divf %99, %100 : vector<16x1xf32>
    %102 = vector.broadcast %94 : vector<16x1xf32> to vector<16x32xf32>
    %103 = arith.subf %88, %102 : vector<16x32xf32>
    %cst_28 = arith.constant 9.99999974E-6 : f32
    %104 = vector.broadcast %cst_28 : f32 to vector<16x1xf32>
    %105 = arith.addf %101, %104 : vector<16x1xf32>
    %106 = math.rsqrt %105 : vector<16x1xf32>
    %107 = vector.broadcast %106 : vector<16x1xf32> to vector<16x32xf32>
    %108 = arith.mulf %103, %107 : vector<16x32xf32>
    %109 = vector.broadcast %89 : vector<1x32xf32> to vector<16x32xf32>
    %110 = arith.mulf %108, %109 : vector<16x32xf32>
    %111 = vector.broadcast %90 : vector<1x32xf32> to vector<16x32xf32>
    %112 = arith.addf %110, %111 : vector<16x32xf32>
    %c0_29 = arith.constant 0 : index
    %c0_30 = arith.constant 0 : index
    %113 = vector.load %arg6[%c0_29, %c0_30] : memref<32x64xf32, #tpu.memory_space<vmem>>, vector<32x64xf32>
    %cst_31 = arith.constant dense<0.000000e+00> : vector<16x64xf32>
    %114 = tpu.matmul %112, %113, %cst_31 {dimension_numbers = #tpu.dot_dimension_numbers<[1], [0], [0], [1], [0, 0, 1, 1], [], []>} : vector<16x32xf32>, vector<32x64xf32>, vector<16x64xf32> -> vector<16x64xf32>
    %cst_32 = arith.constant 0.000000e+00 : f32
    %115 = vector.broadcast %cst_32 : f32 to vector<16x64xf32>
    %116 = arith.maximumf %114, %115 : vector<16x64xf32>
    %c0_33 = arith.constant 0 : index
    %c0_34 = arith.constant 0 : index
    %117 = vector.load %arg7[%c0_33, %c0_34] : memref<64x32xf32, #tpu.memory_space<vmem>>, vector<64x32xf32>
    %cst_35 = arith.constant dense<0.000000e+00> : vector<16x32xf32>
    %118 = tpu.matmul %116, %117, %cst_35 {dimension_numbers = #tpu.dot_dimension_numbers<[1], [0], [0], [1], [0, 0, 1, 1], [], []>} : vector<16x64xf32>, vector<64x32xf32>, vector<16x32xf32> -> vector<16x32xf32>
    %119 = arith.addf %118, %112 : vector<16x32xf32>
    %c0_36 = arith.constant 0 : index
    %c0_37 = arith.constant 0 : index
    %120 = vector.load %arg8[%c0_36, %c0_37] : memref<1x32xf32, #tpu.memory_space<vmem>>, vector<1x32xf32>
    %c0_38 = arith.constant 0 : index
    %c0_39 = arith.constant 0 : index
    %121 = vector.load %arg9[%c0_38, %c0_39] : memref<1x32xf32, #tpu.memory_space<vmem>>, vector<1x32xf32>
    %cst_40 = arith.constant dense<0.000000e+00> : vector<16xf32>
    %122 = vector.multi_reduction <add>, %119, %cst_40 [1] : vector<16x32xf32> to vector<16xf32>
    %123 = vector.shape_cast %122 : vector<16xf32> to vector<16x1xf32>
    %cst_41 = arith.constant 3.200000e+01 : f32
    %124 = vector.broadcast %cst_41 : f32 to vector<16x1xf32>
    %125 = arith.divf %123, %124 : vector<16x1xf32>
    %126 = vector.broadcast %125 : vector<16x1xf32> to vector<16x32xf32>
    %127 = arith.subf %119, %126 : vector<16x32xf32>
    %128 = arith.mulf %127, %127 : vector<16x32xf32>
    %cst_42 = arith.constant dense<0.000000e+00> : vector<16xf32>
    %129 = vector.multi_reduction <add>, %128, %cst_42 [1] : vector<16x32xf32> to vector<16xf32>
    %130 = vector.shape_cast %129 : vector<16xf32> to vector<16x1xf32>
    %cst_43 = arith.constant 3.200000e+01 : f32
    %131 = vector.broadcast %cst_43 : f32 to vector<16x1xf32>
    %132 = arith.divf %130, %131 : vector<16x1xf32>
    %133 = vector.broadcast %125 : vector<16x1xf32> to vector<16x32xf32>
    %134 = arith.subf %119, %133 : vector<16x32xf32>
    %cst_44 = arith.constant 9.99999974E-6 : f32
    %135 = vector.broadcast %cst_44 : f32 to vector<16x1xf32>
    %136 = arith.addf %132, %135 : vector<16x1xf32>
    %137 = math.rsqrt %136 : vector<16x1xf32>
    %138 = vector.broadcast %137 : vector<16x1xf32> to vector<16x32xf32>
    %139 = arith.mulf %134, %138 : vector<16x32xf32>
    %140 = vector.broadcast %120 : vector<1x32xf32> to vector<16x32xf32>
    %141 = arith.mulf %139, %140 : vector<16x32xf32>
    %142 = vector.broadcast %121 : vector<1x32xf32> to vector<16x32xf32>
    %143 = arith.addf %141, %142 : vector<16x32xf32>
    %c0_45 = arith.constant 0 : index
    %c0_46 = arith.constant 0 : index
    %144 = vector.load %arg10[%c0_45, %c0_46] : memref<16x32xf32, #tpu.memory_space<vmem>>, vector<16x32xf32>
    tpu.vector_store %arg10[%c0_45, %c0_46], %143 {strides = array<i32>} : memref<16x32xf32, #tpu.memory_space<vmem>>, vector<16x32xf32>,
    return
  }
}

</mosaic_0001>

<llo_original>
// kernel: encoder_layer.1
$region0: #{encoder_layer.1}
  #allocation0 [shape = 'u32[]', space=smem, size = 0x4, offset = 0x4, fixed_abs, tag = 'smem constant byte address 0x4 - core index']
  #allocation1 [shape = 'u32[72,128]{1,0:T(1,128)}', space=vmem, size = 0x9000, scoped, tag = 'internal scratch']
  %s0 = inlined_call_operand.vmem [shape: f32[16,32], index: 0, kind: input, shape index: {}]
  %s1 = inlined_call_operand.vmem [shape: f32[2,8,8], index: 1, kind: input, shape index: {}]
  %s2 = inlined_call_operand.vmem [shape: f32[32,96], index: 2, kind: input, shape index: {}]
  %s3 = inlined_call_operand.vmem [shape: f32[32,32], index: 3, kind: input, shape index: {}]
  %s4 = inlined_call_operand.vmem [shape: f32[1,32], index: 4, kind: input, shape index: {}]
  %s5 = inlined_call_operand.vmem [shape: f32[1,32], index: 5, kind: input, shape index: {}]
  %s6 = inlined_call_operand.vmem [shape: f32[32,64], index: 6, kind: input, shape index: {}]
  %s7 = inlined_call_operand.vmem [shape: f32[64,32], index: 7, kind: input, shape index: {}]
  %s8 = inlined_call_operand.vmem [shape: f32[1,32], index: 8, kind: input, shape index: {}]
  %s9 = inlined_call_operand.vmem [shape: f32[1,32], index: 9, kind: input, shape index: {}]
  %s10 = inlined_call_operand.hbm [shape: f32[16,32], index: 10, kind: output, shape index: {0}]
  %s11 = inlined_call_operand.hbm [shape: f32[2,4,8,8], index: 11, kind: output, shape index: {1}]
  %12 = xla_tuple %s10, %s11
  %s13 = sld [smem:[#allocation0]]
  $region58: #{encoder_layer.1} parent=0
    _
  %s15 = ssub.s32 1, %s13
  %s16 = scalar_select 0, %s15, %s13
  $region1: #{encoder_layer.1} parent=0
    #allocation2 [shape = 'u8[8192]{0}', space=vmem, size = 0x2000, scoped, tag = 'output window, operand 0, single buffered']
    #allocation3 [shape = 's32[1]{0}', space=sflag, size = 0x4, scoped, tag = 'scoped memory for encoder_layer.1']
    #allocation4 [shape = 'u8[32768]{0}', space=vmem, size = 0x8000, scoped, tag = 'output window, operand 1, single buffered']
    #allocation5 [shape = 's32[1]{0}', space=sflag, size = 0x4, scoped, tag = 'scoped memory for encoder_layer.1']
    %17 = vsyncpa [#allocation3], 0
    %18 = vsyncpa [#allocation5], 0
    // Predicated region
    $region2: #{encoder_layer.1} parent=1 // pred_check
      _
    $region3: #{encoder_layer.1} parent=1 // pred_check_branch
      %20 = sbr.rel (0) target = $region5
    $region4: #{encoder_layer.1} parent=1 // pred_region
      _
    $region5: #{encoder_layer.1} parent=1 // pred_fallthru
      _
    // Predicated region
    $region6: #{encoder_layer.1} parent=1 // pred_check
      _
    $region7: #{encoder_layer.1} parent=1 // pred_check_branch
      %22 = sbr.rel (0) target = $region9
    $region8: #{encoder_layer.1} parent=1 // pred_region
      _
    $region9: #{encoder_layer.1} parent=1 // pred_fallthru
      _
    // Predicated region
    $region10: #{encoder_layer.1} parent=1 // pred_check
      _
    $region11: #{encoder_layer.1} parent=1 // pred_check_branch
      %24 = sbr.rel (0) target = $region13
    $region12: #{encoder_layer.1} parent=1 // pred_region
      _
    $region13: #{encoder_layer.1} parent=1 // pred_fallthru
      _
    // Predicated region
    $region14: #{encoder_layer.1} parent=1 // pred_check
      _
    $region15: #{encoder_layer.1} parent=1 // pred_check_branch
      %26 = sbr.rel (0) target = $region17
    $region16: #{encoder_layer.1} parent=1 // pred_region
      _
    $region17: #{encoder_layer.1} parent=1 // pred_fallthru
      _
    // Predicated region
    $region18: #{encoder_layer.1} parent=1 // pred_check
      _
    $region19: #{encoder_layer.1} parent=1 // pred_check_branch
      %28 = sbr.rel (0) target = $region21
    $region20: #{encoder_layer.1} parent=1 // pred_region
      _
    $region21: #{encoder_layer.1} parent=1 // pred_fallthru
      _
    // Predicated region
    $region22: #{encoder_layer.1} parent=1 // pred_check
      _
    $region23: #{encoder_layer.1} parent=1 // pred_check_branch
      %30 = sbr.rel (0) target = $region25
    $region24: #{encoder_layer.1} parent=1 // pred_region
      _
    $region25: #{encoder_layer.1} parent=1 // pred_fallthru
      _
    // Predicated region
    $region26: #{encoder_layer.1} parent=1 // pred_check
      _
    $region27: #{encoder_layer.1} parent=1 // pred_check_branch
      %32 = sbr.rel (0) target = $region29
    $region28: #{encoder_layer.1} parent=1 // pred_region
      _
    $region29: #{encoder_layer.1} parent=1 // pred_fallthru
      _
    // Predicated region
    $region30: #{encoder_layer.1} parent=1 // pred_check
      _
    $region31: #{encoder_layer.1} parent=1 // pred_check_branch
      %34 = sbr.rel (0) target = $region33
    $region32: #{encoder_layer.1} parent=1 // pred_region
      _
    $region33: #{encoder_layer.1} parent=1 // pred_fallthru
      _
    // Predicated region
    $region34: #{encoder_layer.1} parent=1 // pred_check
      _
    $region35: #{encoder_layer.1} parent=1 // pred_check_branch
      %36 = sbr.rel (0) target = $region37
    $region36: #{encoder_layer.1} parent=1 // pred_region
      _
    $region37: #{encoder_layer.1} parent=1 // pred_fallthru
      _
    // Predicated region
    $region38: #{encoder_layer.1} parent=1 // pred_check
      _
    $region39: #{encoder_layer.1} parent=1 // pred_check_branch
      %38 = sbr.rel (0) target = $region41
    $region40: #{encoder_layer.1} parent=1 // pred_region
      _
    $region41: #{encoder_layer.1} parent=1 // pred_fallthru
      _
    %v39 = vld [vmem:[%s0] sm:$0xff]
    %v40 = vld [vmem:[%s0 + $0x8] sm:$0xff]
    %v41 = vld [vmem:[%s2] sm:$0xff]
    %v42 = vld [vmem:[%s2 + $0x8] sm:$0xff]
    %v43 = vld [vmem:[%s2 + $0x10] sm:$0xff]
    %v44 = vld [vmem:[%s2 + $0x18] sm:$0xff]
    %vm45 = vcmask 261120
    %v47 = vsel %vm45, %v39, 0
    %v50 = vsel %vm45, %v40, 0
    %52 = vmatpush.msra.mxu0 0.0
    %53 = vmatpush.msra.mxu0 0.0
    %54 = vmatpush.msra.mxu0 0.0
    %55 = vmatpush.msra.mxu0 0.0
    %56 = vmatpush.msra.mxu0 0.0
    %57 = vmatpush.msra.mxu0 0.0
    %58 = vmatpush.msra.mxu0 0.0
    %59 = vmatpush.msra.mxu0 0.0
    %60 = vmatpush.msra.mxu0 0.0
    %61 = vmatpush.msra.mxu0 0.0
    %62 = vmatpush.msra.mxu0 0.0
    %63 = vmatpush.msra.mxu0 0.0
    %64 = vmatpush.msra.mxu0 %v44
    %65 = vmatpush.msra.mxu0 %v43
    %66 = vmatpush.msra.mxu0 %v42
    %67 = vmatpush.msra.mxu0 %v41
    %68 = vmatmul.f32.gmra.mxu0 %v47
    %v69 = vpop.f32.mrf.mxu0
    %v70 = vadd.f32 0.0, %v69
    %71 = vmatmul.f32.gmra.mxu0 %v50
    %v72 = vpop.f32.mrf.mxu0
    %v73 = vadd.f32 0.0, %v72
    %74 = vdwg.mxu0
    %77 = vrot.lane.b32.xlu0 %v70, 120
    %v78 = vpop.permute.xlu0 %77
    %79 = vrot.lane.b32.xlu0 %v73, 120
    %v80 = vpop.permute.xlu0 %79
    %83 = vrot.lane.b32.xlu0 %v70, 112
    %v84 = vpop.permute.xlu0 %83
    %85 = vrot.lane.b32.xlu0 %v73, 112
    %v86 = vpop.permute.xlu0 %85
    %89 = vrot.lane.b32.xlu0 %v70, 104
    %v90 = vpop.permute.xlu0 %89
    %91 = vrot.lane.b32.xlu0 %v73, 104
    %v92 = vpop.permute.xlu0 %91
    %v95 = vmul.f32 %v70, 0.35355338
    %v96 = vmul.f32 %v78, 0.35355338
    %v97 = vmul.f32 %v84, 0.35355338
    %v98 = vmul.f32 %v90, 0.35355338
    %v99 = vmul.f32 %v73, 0.35355338
    %v100 = vmul.f32 %v80, 0.35355338
    %v101 = vmul.f32 %v86, 0.35355338
    %v102 = vmul.f32 %v92, 0.35355338
    %103 = vrot.lane.b32.xlu0 %v70, 96
    %v104 = vpop.permute.xlu0 %103
    %vm105 = vcmask 64512
    %v107 = vsel %vm105, %v95, 0
    %v109 = vsel %vm105, %v104, 0
    %111 = vmatpush.xpose.msra.mxu0 0.0
    %112 = vmatpush.xpose.msra.mxu0 0.0
    %113 = vmatpush.xpose.msra.mxu0 0.0
    %114 = vmatpush.xpose.msra.mxu0 0.0
    %115 = vmatpush.xpose.msra.mxu0 0.0
    %116 = vmatpush.xpose.msra.mxu0 0.0
    %117 = vmatpush.xpose.msra.mxu0 0.0
    %118 = vmatpush.xpose.msra.mxu0 0.0
    %119 = vmatpush.xpose.msra.mxu0 0.0
    %120 = vmatpush.xpose.msra.mxu0 0.0
    %121 = vmatpush.xpose.msra.mxu0 0.0
    %122 = vmatpush.xpose.msra.mxu0 0.0
    %123 = vmatpush.xpose.msra.mxu0 0.0
    %124 = vmatpush.xpose.msra.mxu0 0.0
    %125 = vmatpush.xpose.msra.mxu0 0.0
    %126 = vmatpush.xpose.msra.mxu0 %v109
    %127 = vmatmul.f32.gmra.mxu0 %v107
    %v128 = vpop.f32.mrf.mxu0
    %v129 = vadd.f32 0.0, %v128
    %130 = vdwg.mxu0
    %131 = vrot.lane.b32.xlu0 %v78, 96
    %v132 = vpop.permute.xlu0 %131
    %v134 = vsel %vm105, %v96, 0
    %v136 = vsel %vm105, %v132, 0
    %138 = vmatpush.xpose.msra.mxu0 0.0
    %139 = vmatpush.xpose.msra.mxu0 0.0
    %140 = vmatpush.xpose.msra.mxu0 0.0
    %141 = vmatpush.xpose.msra.mxu0 0.0
    %142 = vmatpush.xpose.msra.mxu0 0.0
    %143 = vmatpush.xpose.msra.mxu0 0.0
    %144 = vmatpush.xpose.msra.mxu0 0.0
    %145 = vmatpush.xpose.msra.mxu0 0.0
    %146 = vmatpush.xpose.msra.mxu0 0.0
    %147 = vmatpush.xpose.msra.mxu0 0.0
    %148 = vmatpush.xpose.msra.mxu0 0.0
    %149 = vmatpush.xpose.msra.mxu0 0.0
    %150 = vmatpush.xpose.msra.mxu0 0.0
    %151 = vmatpush.xpose.msra.mxu0 0.0
    %152 = vmatpush.xpose.msra.mxu0 0.0
    %153 = vmatpush.xpose.msra.mxu0 %v136
    %154 = vmatmul.f32.gmra.mxu0 %v134
    %v155 = vpop.f32.mrf.mxu0
    %v156 = vadd.f32 0.0, %v155
    %157 = vdwg.mxu0
    %158 = vrot.lane.b32.xlu0 %v84, 96
    %v159 = vpop.permute.xlu0 %158
    %v161 = vsel %vm105, %v97, 0
    %v163 = vsel %vm105, %v159, 0
    %165 = vmatpush.xpose.msra.mxu0 0.0
    %166 = vmatpush.xpose.msra.mxu0 0.0
    %167 = vmatpush.xpose.msra.mxu0 0.0
    %168 = vmatpush.xpose.msra.mxu0 0.0
    %169 = vmatpush.xpose.msra.mxu0 0.0
    %170 = vmatpush.xpose.msra.mxu0 0.0
    %171 = vmatpush.xpose.msra.mxu0 0.0
    %172 = vmatpush.xpose.msra.mxu0 0.0
    %173 = vmatpush.xpose.msra.mxu0 0.0
    %174 = vmatpush.xpose.msra.mxu0 0.0
    %175 = vmatpush.xpose.msra.mxu0 0.0
    %176 = vmatpush.xpose.msra.mxu0 0.0
    %177 = vmatpush.xpose.msra.mxu0 0.0
    %178 = vmatpush.xpose.msra.mxu0 0.0
    %179 = vmatpush.xpose.msra.mxu0 0.0
    %180 = vmatpush.xpose.msra.mxu0 %v163
    %181 = vmatmul.f32.gmra.mxu0 %v161
    %v182 = vpop.f32.mrf.mxu0
    %v183 = vadd.f32 0.0, %v182
    %184 = vdwg.mxu0
    %185 = vrot.lane.b32.xlu0 %v90, 96
    %v186 = vpop.permute.xlu0 %185
    %v188 = vsel %vm105, %v98, 0
    %v190 = vsel %vm105, %v186, 0
    %192 = vmatpush.xpose.msra.mxu0 0.0
    %193 = vmatpush.xpose.msra.mxu0 0.0
    %194 = vmatpush.xpose.msra.mxu0 0.0
    %195 = vmatpush.xpose.msra.mxu0 0.0
    %196 = vmatpush.xpose.msra.mxu0 0.0
    %197 = vmatpush.xpose.msra.mxu0 0.0
    %198 = vmatpush.xpose.msra.mxu0 0.0
    %199 = vmatpush.xpose.msra.mxu0 0.0
    %200 = vmatpush.xpose.msra.mxu0 0.0
    %201 = vmatpush.xpose.msra.mxu0 0.0
    %202 = vmatpush.xpose.msra.mxu0 0.0
    %203 = vmatpush.xpose.msra.mxu0 0.0
    %204 = vmatpush.xpose.msra.mxu0 0.0
    %205 = vmatpush.xpose.msra.mxu0 0.0
    %206 = vmatpush.xpose.msra.mxu0 0.0
    %207 = vmatpush.xpose.msra.mxu0 %v190
    %208 = vmatmul.f32.gmra.mxu0 %v188
    %v209 = vpop.f32.mrf.mxu0
    %v210 = vadd.f32 0.0, %v209
    %211 = vdwg.mxu0
    %212 = vrot.lane.b32.xlu0 %v73, 96
    %v213 = vpop.permute.xlu0 %212
    %v215 = vsel %vm105, %v99, 0
    %v217 = vsel %vm105, %v213, 0
    %219 = vmatpush.xpose.msra.mxu0 0.0
    %220 = vmatpush.xpose.msra.mxu0 0.0
    %221 = vmatpush.xpose.msra.mxu0 0.0
    %222 = vmatpush.xpose.msra.mxu0 0.0
    %223 = vmatpush.xpose.msra.mxu0 0.0
    %224 = vmatpush.xpose.msra.mxu0 0.0
    %225 = vmatpush.xpose.msra.mxu0 0.0
    %226 = vmatpush.xpose.msra.mxu0 0.0
    %227 = vmatpush.xpose.msra.mxu0 0.0
    %228 = vmatpush.xpose.msra.mxu0 0.0
    %229 = vmatpush.xpose.msra.mxu0 0.0
    %230 = vmatpush.xpose.msra.mxu0 0.0
    %231 = vmatpush.xpose.msra.mxu0 0.0
    %232 = vmatpush.xpose.msra.mxu0 0.0
    %233 = vmatpush.xpose.msra.mxu0 0.0
    %234 = vmatpush.xpose.msra.mxu0 %v217
    %235 = vmatmul.f32.gmra.mxu0 %v215
    %v236 = vpop.f32.mrf.mxu0
    %v237 = vadd.f32 0.0, %v236
    %238 = vdwg.mxu0
    %239 = vrot.lane.b32.xlu0 %v80, 96
    %v240 = vpop.permute.xlu0 %239
    %v242 = vsel %vm105, %v100, 0
    %v244 = vsel %vm105, %v240, 0
    %246 = vmatpush.xpose.msra.mxu0 0.0
    %247 = vmatpush.xpose.msra.mxu0 0.0
    %248 = vmatpush.xpose.msra.mxu0 0.0
    %249 = vmatpush.xpose.msra.mxu0 0.0
    %250 = vmatpush.xpose.msra.mxu0 0.0
    %251 = vmatpush.xpose.msra.mxu0 0.0
    %252 = vmatpush.xpose.msra.mxu0 0.0
    %253 = vmatpush.xpose.msra.mxu0 0.0
    %254 = vmatpush.xpose.msra.mxu0 0.0
    %255 = vmatpush.xpose.msra.mxu0 0.0
    %256 = vmatpush.xpose.msra.mxu0 0.0
    %257 = vmatpush.xpose.msra.mxu0 0.0
    %258 = vmatpush.xpose.msra.mxu0 0.0
    %259 = vmatpush.xpose.msra.mxu0 0.0
    %260 = vmatpush.xpose.msra.mxu0 0.0
    %261 = vmatpush.xpose.msra.mxu0 %v244
    %262 = vmatmul.f32.gmra.mxu0 %v242
    %v263 = vpop.f32.mrf.mxu0
    %v264 = vadd.f32 0.0, %v263
    %265 = vdwg.mxu0
    %266 = vrot.lane.b32.xlu0 %v86, 96
    %v267 = vpop.permute.xlu0 %266
    %v269 = vsel %vm105, %v101, 0
    %v271 = vsel %vm105, %v267, 0
    %273 = vmatpush.xpose.msra.mxu0 0.0
    %274 = vmatpush.xpose.msra.mxu0 0.0
    %275 = vmatpush.xpose.msra.mxu0 0.0
    %276 = vmatpush.xpose.msra.mxu0 0.0
    %277 = vmatpush.xpose.msra.mxu0 0.0
    %278 = vmatpush.xpose.msra.mxu0 0.0
    %279 = vmatpush.xpose.msra.mxu0 0.0
    %280 = vmatpush.xpose.msra.mxu0 0.0
    %281 = vmatpush.xpose.msra.mxu0 0.0
    %282 = vmatpush.xpose.msra.mxu0 0.0
    %283 = vmatpush.xpose.msra.mxu0 0.0
    %284 = vmatpush.xpose.msra.mxu0 0.0
    %285 = vmatpush.xpose.msra.mxu0 0.0
    %286 = vmatpush.xpose.msra.mxu0 0.0
    %287 = vmatpush.xpose.msra.mxu0 0.0
    %288 = vmatpush.xpose.msra.mxu0 %v271
    %289 = vmatmul.f32.gmra.mxu0 %v269
    %v290 = vpop.f32.mrf.mxu0
    %v291 = vadd.f32 0.0, %v290
    %292 = vdwg.mxu0
    %293 = vrot.lane.b32.xlu0 %v92, 96
    %v294 = vpop.permute.xlu0 %293
    %v296 = vsel %vm105, %v102, 0
    %v298 = vsel %vm105, %v294, 0
    %300 = vmatpush.xpose.msra.mxu0 0.0
    %301 = vmatpush.xpose.msra.mxu0 0.0
    %302 = vmatpush.xpose.msra.mxu0 0.0
    %303 = vmatpush.xpose.msra.mxu0 0.0
    %304 = vmatpush.xpose.msra.mxu0 0.0
    %305 = vmatpush.xpose.msra.mxu0 0.0
    %306 = vmatpush.xpose.msra.mxu0 0.0
    %307 = vmatpush.xpose.msra.mxu0 0.0
    %308 = vmatpush.xpose.msra.mxu0 0.0
    %309 = vmatpush.xpose.msra.mxu0 0.0
    %310 = vmatpush.xpose.msra.mxu0 0.0
    %311 = vmatpush.xpose.msra.mxu0 0.0
    %312 = vmatpush.xpose.msra.mxu0 0.0
    %313 = vmatpush.xpose.msra.mxu0 0.0
    %314 = vmatpush.xpose.msra.mxu0 0.0
    %315 = vmatpush.xpose.msra.mxu0 %v298
    %316 = vmatmul.f32.gmra.mxu0 %v296
    %v317 = vpop.f32.mrf.mxu0
    %v318 = vadd.f32 0.0, %v317
    %319 = vdwg.mxu0
    %v320 = vld [vmem:[%s1] sm:$0xff]
    %v321 = vld [vmem:[%s1 + $0x8] sm:$0xff]
    %vm322 = vcmp.gt.f32.partialorder %v320, 0.5
    %vm323 = vcmp.gt.f32.partialorder %v321, 0.5
    %v324 = vsel %vm322, -10000.0, %v129
    %v325 = vsel %vm322, -10000.0, %v156
    %v326 = vsel %vm322, -10000.0, %v183
    %v327 = vsel %vm322, -10000.0, %v210
    %v328 = vsel %vm323, -10000.0, %v237
    %v329 = vsel %vm323, -10000.0, %v264
    %v330 = vsel %vm323, -10000.0, %v291
    %v331 = vsel %vm323, -10000.0, %v318
    %v332 = vsel %vm105, %v324, -inf
    %333 = vmax.xlane.f32.xlu0 %v332
    %v334 = vpop.xlane.xlu0 %333
    %v335 = vsel %vm105, %v325, -inf
    %336 = vmax.xlane.f32.xlu0 %v335
    %v337 = vpop.xlane.xlu0 %336
    %v338 = vsel %vm105, %v326, -inf
    %339 = vmax.xlane.f32.xlu0 %v338
    %v340 = vpop.xlane.xlu0 %339
    %v341 = vsel %vm105, %v327, -inf
    %342 = vmax.xlane.f32.xlu0 %v341
    %v343 = vpop.xlane.xlu0 %342
    %v344 = vsel %vm105, %v328, -inf
    %345 = vmax.xlane.f32.xlu0 %v344
    %v346 = vpop.xlane.xlu0 %345
    %v347 = vsel %vm105, %v329, -inf
    %348 = vmax.xlane.f32.xlu0 %v347
    %v349 = vpop.xlane.xlu0 %348
    %v350 = vsel %vm105, %v330, -inf
    %351 = vmax.xlane.f32.xlu0 %v350
    %v352 = vpop.xlane.xlu0 %351
    %v353 = vsel %vm105, %v331, -inf
    %354 = vmax.xlane.f32.xlu0 %v353
    %v355 = vpop.xlane.xlu0 %354
    %v356 = vsub.f32 %v324, %v334
    %v357 = vsub.f32 %v325, %v337
    %v358 = vsub.f32 %v326, %v340
    %v359 = vsub.f32 %v327, %v343
    %v360 = vsub.f32 %v328, %v346
    %v361 = vsub.f32 %v329, %v349
    %v362 = vsub.f32 %v330, %v352
    %v363 = vsub.f32 %v331, %v355
    %v364 = vmul.f32 %v356, 1.442695
    %v365 = vpow.pop %v364
    %v366 = vmul.f32 %v357, 1.442695
    %v367 = vpow.pop %v366
    %v368 = vmul.f32 %v358, 1.442695
    %v369 = vpow.pop %v368
    %v370 = vmul.f32 %v359, 1.442695
    %v371 = vpow.pop %v370
    %v372 = vmul.f32 %v360, 1.442695
    %v373 = vpow.pop %v372
    %v374 = vmul.f32 %v361, 1.442695
    %v375 = vpow.pop %v374
    %v376 = vmul.f32 %v362, 1.442695
    %v377 = vpow.pop %v376
    %v378 = vmul.f32 %v363, 1.442695
    %v379 = vpow.pop %v378
    %v380 = vsel %vm105, %v365, 0.0
    %381 = vadd.xlane.f32.xlu0 %v380
    %v382 = vpop.xlane.xlu0 %381
    %v383 = vsel %vm105, %v367, 0.0
    %384 = vadd.xlane.f32.xlu0 %v383
    %v385 = vpop.xlane.xlu0 %384
    %v386 = vsel %vm105, %v369, 0.0
    %387 = vadd.xlane.f32.xlu0 %v386
    %v388 = vpop.xlane.xlu0 %387
    %v389 = vsel %vm105, %v371, 0.0
    %390 = vadd.xlane.f32.xlu0 %v389
    %v391 = vpop.xlane.xlu0 %390
    %v392 = vsel %vm105, %v373, 0.0
    %393 = vadd.xlane.f32.xlu0 %v392
    %v394 = vpop.xlane.xlu0 %393
    %v395 = vsel %vm105, %v375, 0.0
    %396 = vadd.xlane.f32.xlu0 %v395
    %v397 = vpop.xlane.xlu0 %396
    %v398 = vsel %vm105, %v377, 0.0
    %399 = vadd.xlane.f32.xlu0 %v398
    %v400 = vpop.xlane.xlu0 %399
    %v401 = vsel %vm105, %v379, 0.0
    %402 = vadd.xlane.f32.xlu0 %v401
    %v403 = vpop.xlane.xlu0 %402
    %v404 = vrcp.pop %v382
    %v405 = vrcp.pop %v385
    %v406 = vrcp.pop %v388
    %v407 = vrcp.pop %v391
    %v408 = vrcp.pop %v394
    %v409 = vrcp.pop %v397
    %v410 = vrcp.pop %v400
    %v411 = vrcp.pop %v403
    %v412 = vmul.f32 %v365, %v404
    %v413 = vmul.f32 %v367, %v405
    %v414 = vmul.f32 %v369, %v406
    %v415 = vmul.f32 %v371, %v407
    %v416 = vmul.f32 %v373, %v408
    %v417 = vmul.f32 %v375, %v409
    %v418 = vmul.f32 %v377, %v410
    %v419 = vmul.f32 %v379, %v411
    %420 = vst.msk [vmem:[#allocation4] sm:$0xff] %vm105, %v412
    %421 = vst.msk [vmem:[#allocation4 + $0x8] sm:$0xff] %vm105, %v413
    %422 = vst.msk [vmem:[#allocation4 + $0x10] sm:$0xff] %vm105, %v414
    %423 = vst.msk [vmem:[#allocation4 + $0x18] sm:$0xff] %vm105, %v415
    %424 = vst.msk [vmem:[#allocation4 + $0x20] sm:$0xff] %vm105, %v416
    %425 = vst.msk [vmem:[#allocation4 + $0x28] sm:$0xff] %vm105, %v417
    %426 = vst.msk [vmem:[#allocation4 + $0x30] sm:$0xff] %vm105, %v418
    %427 = vst.msk [vmem:[#allocation4 + $0x38] sm:$0xff] %vm105, %v419
    %428 = vrot.lane.b32.xlu0 %v70, 64
    %v429 = vpop.permute.xlu0 %428
    %v432 = vsel %vm105, %v412, 0
    %434 = vmatpush.msra.mxu0 0.0
    %435 = vmatpush.msra.mxu0 0.0
    %436 = vmatpush.msra.mxu0 0.0
    %437 = vmatpush.msra.mxu0 0.0
    %438 = vmatpush.msra.mxu0 0.0
    %439 = vmatpush.msra.mxu0 0.0
    %440 = vmatpush.msra.mxu0 0.0
    %441 = vmatpush.msra.mxu0 0.0
    %442 = vmatpush.msra.mxu0 0.0
    %443 = vmatpush.msra.mxu0 0.0
    %444 = vmatpush.msra.mxu0 0.0
    %445 = vmatpush.msra.mxu0 0.0
    %446 = vmatpush.msra.mxu0 0.0
    %447 = vmatpush.msra.mxu0 0.0
    %448 = vmatpush.msra.mxu0 0.0
    %449 = vmatpush.msra.mxu0 %v429
    %450 = vmatmul.f32.gmra.mxu0 %v432
    %v451 = vpop.f32.mrf.mxu0
    %v452 = vadd.f32 0.0, %v451
    %453 = vdwg.mxu0
    %454 = vrot.lane.b32.xlu0 %v78, 64
    %v455 = vpop.permute.xlu0 %454
    %v458 = vsel %vm105, %v413, 0
    %460 = vmatpush.msra.mxu0 0.0
    %461 = vmatpush.msra.mxu0 0.0
    %462 = vmatpush.msra.mxu0 0.0
    %463 = vmatpush.msra.mxu0 0.0
    %464 = vmatpush.msra.mxu0 0.0
    %465 = vmatpush.msra.mxu0 0.0
    %466 = vmatpush.msra.mxu0 0.0
    %467 = vmatpush.msra.mxu0 0.0
    %468 = vmatpush.msra.mxu0 0.0
    %469 = vmatpush.msra.mxu0 0.0
    %470 = vmatpush.msra.mxu0 0.0
    %471 = vmatpush.msra.mxu0 0.0
    %472 = vmatpush.msra.mxu0 0.0
    %473 = vmatpush.msra.mxu0 0.0
    %474 = vmatpush.msra.mxu0 0.0
    %475 = vmatpush.msra.mxu0 %v455
    %476 = vmatmul.f32.gmra.mxu0 %v458
    %v477 = vpop.f32.mrf.mxu0
    %v478 = vadd.f32 0.0, %v477
    %479 = vdwg.mxu0
    %480 = vrot.lane.b32.xlu0 %v84, 64
    %v481 = vpop.permute.xlu0 %480
    %v484 = vsel %vm105, %v414, 0
    %486 = vmatpush.msra.mxu0 0.0
    %487 = vmatpush.msra.mxu0 0.0
    %488 = vmatpush.msra.mxu0 0.0
    %489 = vmatpush.msra.mxu0 0.0
    %490 = vmatpush.msra.mxu0 0.0
    %491 = vmatpush.msra.mxu0 0.0
    %492 = vmatpush.msra.mxu0 0.0
    %493 = vmatpush.msra.mxu0 0.0
    %494 = vmatpush.msra.mxu0 0.0
    %495 = vmatpush.msra.mxu0 0.0
    %496 = vmatpush.msra.mxu0 0.0
    %497 = vmatpush.msra.mxu0 0.0
    %498 = vmatpush.msra.mxu0 0.0
    %499 = vmatpush.msra.mxu0 0.0
    %500 = vmatpush.msra.mxu0 0.0
    %501 = vmatpush.msra.mxu0 %v481
    %502 = vmatmul.f32.gmra.mxu0 %v484
    %v503 = vpop.f32.mrf.mxu0
    %v504 = vadd.f32 0.0, %v503
    %505 = vdwg.mxu0
    %506 = vrot.lane.b32.xlu0 %v90, 64
    %v507 = vpop.permute.xlu0 %506
    %v510 = vsel %vm105, %v415, 0
    %512 = vmatpush.msra.mxu0 0.0
    %513 = vmatpush.msra.mxu0 0.0
    %514 = vmatpush.msra.mxu0 0.0
    %515 = vmatpush.msra.mxu0 0.0
    %516 = vmatpush.msra.mxu0 0.0
    %517 = vmatpush.msra.mxu0 0.0
    %518 = vmatpush.msra.mxu0 0.0
    %519 = vmatpush.msra.mxu0 0.0
    %520 = vmatpush.msra.mxu0 0.0
    %521 = vmatpush.msra.mxu0 0.0
    %522 = vmatpush.msra.mxu0 0.0
    %523 = vmatpush.msra.mxu0 0.0
    %524 = vmatpush.msra.mxu0 0.0
    %525 = vmatpush.msra.mxu0 0.0
    %526 = vmatpush.msra.mxu0 0.0
    %527 = vmatpush.msra.mxu0 %v507
    %528 = vmatmul.f32.gmra.mxu0 %v510
    %v529 = vpop.f32.mrf.mxu0
    %v530 = vadd.f32 0.0, %v529
    %531 = vdwg.mxu0
    %532 = vrot.lane.b32.xlu0 %v73, 64
    %v533 = vpop.permute.xlu0 %532
    %v536 = vsel %vm105, %v416, 0
    %538 = vmatpush.msra.mxu0 0.0
    %539 = vmatpush.msra.mxu0 0.0
    %540 = vmatpush.msra.mxu0 0.0
    %541 = vmatpush.msra.mxu0 0.0
    %542 = vmatpush.msra.mxu0 0.0
    %543 = vmatpush.msra.mxu0 0.0
    %544 = vmatpush.msra.mxu0 0.0
    %545 = vmatpush.msra.mxu0 0.0
    %546 = vmatpush.msra.mxu0 0.0
    %547 = vmatpush.msra.mxu0 0.0
    %548 = vmatpush.msra.mxu0 0.0
    %549 = vmatpush.msra.mxu0 0.0
    %550 = vmatpush.msra.mxu0 0.0
    %551 = vmatpush.msra.mxu0 0.0
    %552 = vmatpush.msra.mxu0 0.0
    %553 = vmatpush.msra.mxu0 %v533
    %554 = vmatmul.f32.gmra.mxu0 %v536
    %v555 = vpop.f32.mrf.mxu0
    %v556 = vadd.f32 0.0, %v555
    %557 = vdwg.mxu0
    %558 = vrot.lane.b32.xlu0 %v80, 64
    %v559 = vpop.permute.xlu0 %558
    %v562 = vsel %vm105, %v417, 0
    %564 = vmatpush.msra.mxu0 0.0
    %565 = vmatpush.msra.mxu0 0.0
    %566 = vmatpush.msra.mxu0 0.0
    %567 = vmatpush.msra.mxu0 0.0
    %568 = vmatpush.msra.mxu0 0.0
    %569 = vmatpush.msra.mxu0 0.0
    %570 = vmatpush.msra.mxu0 0.0
    %571 = vmatpush.msra.mxu0 0.0
    %572 = vmatpush.msra.mxu0 0.0
    %573 = vmatpush.msra.mxu0 0.0
    %574 = vmatpush.msra.mxu0 0.0
    %575 = vmatpush.msra.mxu0 0.0
    %576 = vmatpush.msra.mxu0 0.0
    %577 = vmatpush.msra.mxu0 0.0
    %578 = vmatpush.msra.mxu0 0.0
    %579 = vmatpush.msra.mxu0 %v559
    %580 = vmatmul.f32.gmra.mxu0 %v562
    %v581 = vpop.f32.mrf.mxu0
    %v582 = vadd.f32 0.0, %v581
    %583 = vdwg.mxu0
    %584 = vrot.lane.b32.xlu0 %v86, 64
    %v585 = vpop.permute.xlu0 %584
    %v588 = vsel %vm105, %v418, 0
    %590 = vmatpush.msra.mxu0 0.0
    %591 = vmatpush.msra.mxu0 0.0
    %592 = vmatpush.msra.mxu0 0.0
    %593 = vmatpush.msra.mxu0 0.0
    %594 = vmatpush.msra.mxu0 0.0
    %595 = vmatpush.msra.mxu0 0.0
    %596 = vmatpush.msra.mxu0 0.0
    %597 = vmatpush.msra.mxu0 0.0
    %598 = vmatpush.msra.mxu0 0.0
    %599 = vmatpush.msra.mxu0 0.0
    %600 = vmatpush.msra.mxu0 0.0
    %601 = vmatpush.msra.mxu0 0.0
    %602 = vmatpush.msra.mxu0 0.0
    %603 = vmatpush.msra.mxu0 0.0
    %604 = vmatpush.msra.mxu0 0.0
    %605 = vmatpush.msra.mxu0 %v585
    %606 = vmatmul.f32.gmra.mxu0 %v588
    %v607 = vpop.f32.mrf.mxu0
    %v608 = vadd.f32 0.0, %v607
    %609 = vdwg.mxu0
    %610 = vrot.lane.b32.xlu0 %v92, 64
    %v611 = vpop.permute.xlu0 %610
    %v614 = vsel %vm105, %v419, 0
    %616 = vmatpush.msra.mxu0 0.0
    %617 = vmatpush.msra.mxu0 0.0
    %618 = vmatpush.msra.mxu0 0.0
    %619 = vmatpush.msra.mxu0 0.0
    %620 = vmatpush.msra.mxu0 0.0
    %621 = vmatpush.msra.mxu0 0.0
    %622 = vmatpush.msra.mxu0 0.0
    %623 = vmatpush.msra.mxu0 0.0
    %624 = vmatpush.msra.mxu0 0.0
    %625 = vmatpush.msra.mxu0 0.0
    %626 = vmatpush.msra.mxu0 0.0
    %627 = vmatpush.msra.mxu0 0.0
    %628 = vmatpush.msra.mxu0 0.0
    %629 = vmatpush.msra.mxu0 0.0
    %630 = vmatpush.msra.mxu0 0.0
    %631 = vmatpush.msra.mxu0 %v611
    %632 = vmatmul.f32.gmra.mxu0 %v614
    %v633 = vpop.f32.mrf.mxu0
    %v634 = vadd.f32 0.0, %v633
    %635 = vdwg.mxu0
    %638 = vrot.lane.b32.xlu0 %v478, 8
    %v639 = vpop.permute.xlu0 %638
    %640 = vrot.lane.b32.xlu0 %v582, 8
    %v641 = vpop.permute.xlu0 %640
    %646 = vrot.lane.b32.xlu0 %v504, 16
    %v647 = vpop.permute.xlu0 %646
    %648 = vrot.lane.b32.xlu0 %v608, 16
    %v649 = vpop.permute.xlu0 %648
    %654 = vrot.lane.b32.xlu0 %v530, 24
    %v655 = vpop.permute.xlu0 %654
    %656 = vrot.lane.b32.xlu0 %v634, 24
    %v657 = vpop.permute.xlu0 %656
    %v660 = vsel %vm105, %v452, %v639
    %v661 = vsel %vm105, %v556, %v641
    %vm662 = vcmask 130048
    %v663 = vsel %vm662, %v660, %v647
    %v664 = vsel %vm662, %v661, %v649
    %vm665 = vcmask 195584
    %v666 = vsel %vm665, %v663, %v655
    %v667 = vsel %vm665, %v664, %v657
    %v668 = vld [vmem:[%s3] sm:$0xff]
    %v669 = vld [vmem:[%s3 + $0x8] sm:$0xff]
    %v670 = vld [vmem:[%s3 + $0x10] sm:$0xff]
    %v671 = vld [vmem:[%s3 + $0x18] sm:$0xff]
    %v673 = vsel %vm45, %v666, 0
    %v676 = vsel %vm45, %v667, 0
    %678 = vmatpush.msra.mxu0 0.0
    %679 = vmatpush.msra.mxu0 0.0
    %680 = vmatpush.msra.mxu0 0.0
    %681 = vmatpush.msra.mxu0 0.0
    %682 = vmatpush.msra.mxu0 0.0
    %683 = vmatpush.msra.mxu0 0.0
    %684 = vmatpush.msra.mxu0 0.0
    %685 = vmatpush.msra.mxu0 0.0
    %686 = vmatpush.msra.mxu0 0.0
    %687 = vmatpush.msra.mxu0 0.0
    %688 = vmatpush.msra.mxu0 0.0
    %689 = vmatpush.msra.mxu0 0.0
    %690 = vmatpush.msra.mxu0 %v671
    %691 = vmatpush.msra.mxu0 %v670
    %692 = vmatpush.msra.mxu0 %v669
    %693 = vmatpush.msra.mxu0 %v668
    %694 = vmatmul.f32.gmra.mxu0 %v673
    %v695 = vpop.f32.mrf.mxu0
    %v696 = vadd.f32 %v39, %v695
    %697 = vmatmul.f32.gmra.mxu0 %v676
    %v698 = vpop.f32.mrf.mxu0
    %v699 = vadd.f32 %v40, %v698
    %700 = vdwg.mxu0
    %v701 = vld [vmem:[%s4] sm:$0x1]
    %v702 = vld [vmem:[%s5] sm:$0x1]
    %v703 = vsel %vm45, %v696, 0.0
    %704 = vadd.xlane.f32.xlu0 %v703
    %v705 = vpop.xlane.xlu0 %704
    %v706 = vsel %vm45, %v699, 0.0
    %707 = vadd.xlane.f32.xlu0 %v706
    %v708 = vpop.xlane.xlu0 %707
    %v709 = vrcp.pop 32.0
    %v710 = vmul.f32 32.0, %v709
    %v711 = vsub.f32 1.0, %v710
    %v712 = vmul.f32 %v709, %v711
    %v713 = vadd.f32 %v709, %v712
    %vm714 = vweird.f32 %v709
    %v715 = vsel %vm714, %v709, %v713
    %v716 = vmul.f32 %v705, %v715
    %v717 = vmul.f32 %v708, %v715
    %v718 = vsub.f32 %v696, %v716
    %v719 = vsub.f32 %v699, %v717
    %v720 = vmul.f32 %v718, %v718
    %v721 = vmul.f32 %v719, %v719
    %v722 = vsel %vm45, %v720, 0.0
    %723 = vadd.xlane.f32.xlu0 %v722
    %v724 = vpop.xlane.xlu0 %723
    %v725 = vsel %vm45, %v721, 0.0
    %726 = vadd.xlane.f32.xlu0 %v725
    %v727 = vpop.xlane.xlu0 %726
    %v728 = vmul.f32 %v724, %v715
    %v729 = vmul.f32 %v727, %v715
    %v730 = vadd.f32 %v728, 1e-05
    %v731 = vadd.f32 %v729, 1e-05
    %v732 = vrsqrt.pop %v730
    %v733 = vmul.f32 %v732, %v730
    %v734 = vmul.f32 %v733, %v732
    %v735 = vmul.f32 0.5, %v734
    %v736 = vsub.f32 1.5, %v735
    %v737 = vmul.f32 %v732, %v736
    %vm738 = vweird.f32 %v730
    %vm739 = vweird.f32 %v732
    %vm740 = vmor %vm738, %vm739
    %v741 = vsel %vm740, %v732, %v737
    %v742 = vrsqrt.pop %v731
    %v743 = vmul.f32 %v742, %v731
    %v744 = vmul.f32 %v743, %v742
    %v745 = vmul.f32 0.5, %v744
    %v746 = vsub.f32 1.5, %v745
    %v747 = vmul.f32 %v742, %v746
    %vm748 = vweird.f32 %v731
    %vm749 = vweird.f32 %v742
    %vm750 = vmor %vm748, %vm749
    %v751 = vsel %vm750, %v742, %v747
    %v752 = vmul.f32 %v718, %v741
    %v753 = vmul.f32 %v719, %v751
    %v755 = vperm.slane %v701, 0
    %v757 = vmul.f32 %v752, %v755
    %v758 = vmul.f32 %v753, %v755
    %v760 = vperm.slane %v702, 0
    %v762 = vadd.f32 %v757, %v760
    %v763 = vadd.f32 %v758, %v760
    %v764 = vld [vmem:[%s6] sm:$0xff]
    %v765 = vld [vmem:[%s6 + $0x8] sm:$0xff]
    %v766 = vld [vmem:[%s6 + $0x10] sm:$0xff]
    %v767 = vld [vmem:[%s6 + $0x18] sm:$0xff]
    %v769 = vsel %vm45, %v762, 0
    %v772 = vsel %vm45, %v763, 0
    %774 = vmatpush.msra.mxu0 0.0
    %775 = vmatpush.msra.mxu0 0.0
    %776 = vmatpush.msra.mxu0 0.0
    %777 = vmatpush.msra.mxu0 0.0
    %778 = vmatpush.msra.mxu0 0.0
    %779 = vmatpush.msra.mxu0 0.0
    %780 = vmatpush.msra.mxu0 0.0
    %781 = vmatpush.msra.mxu0 0.0
    %782 = vmatpush.msra.mxu0 0.0
    %783 = vmatpush.msra.mxu0 0.0
    %784 = vmatpush.msra.mxu0 0.0
    %785 = vmatpush.msra.mxu0 0.0
    %786 = vmatpush.msra.mxu0 %v767
    %787 = vmatpush.msra.mxu0 %v766
    %788 = vmatpush.msra.mxu0 %v765
    %789 = vmatpush.msra.mxu0 %v764
    %790 = vmatmul.f32.gmra.mxu0 %v769
    %v791 = vpop.f32.mrf.mxu0
    %v792 = vadd.f32 0.0, %v791
    %793 = vmatmul.f32.gmra.mxu0 %v772
    %v794 = vpop.f32.mrf.mxu0
    %v795 = vadd.f32 0.0, %v794
    %796 = vdwg.mxu0
    %v797 = vmax.f32 %v792, 0.0
    %v798 = vmax.f32 %v795, 0.0
    %v799 = vld [vmem:[%s7] sm:$0xff]
    %v800 = vld [vmem:[%s7 + $0x8] sm:$0xff]
    %v801 = vld [vmem:[%s7 + $0x10] sm:$0xff]
    %v802 = vld [vmem:[%s7 + $0x18] sm:$0xff]
    %v803 = vld [vmem:[%s7 + $0x20] sm:$0xff]
    %v804 = vld [vmem:[%s7 + $0x28] sm:$0xff]
    %v805 = vld [vmem:[%s7 + $0x30] sm:$0xff]
    %v806 = vld [vmem:[%s7 + $0x38] sm:$0xff]
    %vm807 = vcmask 523264
    %v809 = vsel %vm807, %v797, 0
    %v812 = vsel %vm807, %v798, 0
    %814 = vmatpush.msra.mxu0 0.0
    %815 = vmatpush.msra.mxu0 0.0
    %816 = vmatpush.msra.mxu0 0.0
    %817 = vmatpush.msra.mxu0 0.0
    %818 = vmatpush.msra.mxu0 0.0
    %819 = vmatpush.msra.mxu0 0.0
    %820 = vmatpush.msra.mxu0 0.0
    %821 = vmatpush.msra.mxu0 0.0
    %822 = vmatpush.msra.mxu0 %v806
    %823 = vmatpush.msra.mxu0 %v805
    %824 = vmatpush.msra.mxu0 %v804
    %825 = vmatpush.msra.mxu0 %v803
    %826 = vmatpush.msra.mxu0 %v802
    %827 = vmatpush.msra.mxu0 %v801
    %828 = vmatpush.msra.mxu0 %v800
    %829 = vmatpush.msra.mxu0 %v799
    %830 = vmatmul.f32.gmra.mxu0 %v809
    %v831 = vpop.f32.mrf.mxu0
    %v832 = vadd.f32 %v762, %v831
    %833 = vmatmul.f32.gmra.mxu0 %v812
    %v834 = vpop.f32.mrf.mxu0
    %v835 = vadd.f32 %v763, %v834
    %836 = vdwg.mxu0
    %v837 = vld [vmem:[%s8] sm:$0x1]
    %v838 = vld [vmem:[%s9] sm:$0x1]
    %v839 = vsel %vm45, %v832, 0.0
    %840 = vadd.xlane.f32.xlu0 %v839
    %v841 = vpop.xlane.xlu0 %840
    %v842 = vsel %vm45, %v835, 0.0
    %843 = vadd.xlane.f32.xlu0 %v842
    %v844 = vpop.xlane.xlu0 %843
    %v845 = vmul.f32 %v841, %v715
    %v846 = vmul.f32 %v844, %v715
    %v847 = vsub.f32 %v832, %v845
    %v848 = vsub.f32 %v835, %v846
    %v849 = vmul.f32 %v847, %v847
    %v850 = vmul.f32 %v848, %v848
    %v851 = vsel %vm45, %v849, 0.0
    %852 = vadd.xlane.f32.xlu0 %v851
    %v853 = vpop.xlane.xlu0 %852
    %v854 = vsel %vm45, %v850, 0.0
    %855 = vadd.xlane.f32.xlu0 %v854
    %v856 = vpop.xlane.xlu0 %855
    %v857 = vmul.f32 %v853, %v715
    %v858 = vmul.f32 %v856, %v715
    %v859 = vadd.f32 %v857, 1e-05
    %v860 = vadd.f32 %v858, 1e-05
    %v861 = vrsqrt.pop %v859
    %v862 = vmul.f32 %v861, %v859
    %v863 = vmul.f32 %v862, %v861
    %v864 = vmul.f32 0.5, %v863
    %v865 = vsub.f32 1.5, %v864
    %v866 = vmul.f32 %v861, %v865
    %vm867 = vweird.f32 %v859
    %vm868 = vweird.f32 %v861
    %vm869 = vmor %vm867, %vm868
    %v870 = vsel %vm869, %v861, %v866
    %v871 = vrsqrt.pop %v860
    %v872 = vmul.f32 %v871, %v860
    %v873 = vmul.f32 %v872, %v871
    %v874 = vmul.f32 0.5, %v873
    %v875 = vsub.f32 1.5, %v874
    %v876 = vmul.f32 %v871, %v875
    %vm877 = vweird.f32 %v860
    %vm878 = vweird.f32 %v871
    %vm879 = vmor %vm877, %vm878
    %v880 = vsel %vm879, %v871, %v876
    %v881 = vmul.f32 %v847, %v870
    %v882 = vmul.f32 %v848, %v880
    %v884 = vperm.slane %v837, 0
    %v886 = vmul.f32 %v881, %v884
    %v887 = vmul.f32 %v882, %v884
    %v889 = vperm.slane %v838, 0
    %v891 = vadd.f32 %v886, %v889
    %v892 = vadd.f32 %v887, %v889
    %893 = vst.msk [vmem:[#allocation2] sm:$0xff] %vm45, %v891
    %894 = vst.msk [vmem:[#allocation2 + $0x8] sm:$0xff] %vm45, %v892
    // Predicated region
    $region42: #{encoder_layer.1} parent=1 // pred_check
      _
    $region43: #{encoder_layer.1} parent=1 // pred_check_branch
      %896 = sbr.rel (0) target = $region45
    $region44: #{encoder_layer.1} parent=1 // pred_region
      %898 = vsyncadd [#allocation3], 0
      %s899 = sshll.u32 [#allocation2], 4
      %s900 = int_to_ptr.vmem [resolvable:$true] %s899
      %s901 = sshll.u32 %s10, 4
      %s902 = int_to_ptr.hbm [resolvable:$true] %s901
      %907 = dma.vmem_to_hbm [thread:$0]  %s900, 256, %s902, [#allocation3], 128, 128, 8
    $region45: #{encoder_layer.1} parent=1 // pred_fallthru
      _
    // Predicated region
    $region46: #{encoder_layer.1} parent=1 // pred_check
      _
    $region47: #{encoder_layer.1} parent=1 // pred_check_branch
      %909 = sbr.rel (0) target = $region49
    $region48: #{encoder_layer.1} parent=1 // pred_region
      %911 = vsyncadd [#allocation5], 0
      %s912 = sshll.u32 [#allocation4], 4
      %s913 = int_to_ptr.vmem [resolvable:$true] %s912
      %s914 = sshll.u32 %s11, 4
      %s915 = int_to_ptr.hbm [resolvable:$true] %s914
      %920 = dma.vmem_to_hbm [thread:$0]  %s913, 1024, %s915, [#allocation5], 128, 128, 8
    $region49: #{encoder_layer.1} parent=1 // pred_fallthru
      _
    // Predicated region
    $region50: #{encoder_layer.1} parent=1 // pred_check
      _
    $region51: #{encoder_layer.1} parent=1 // pred_check_branch
      %922 = sbr.rel (0) target = $region53
    $region52: #{encoder_layer.1} parent=1 // pred_region
      %924 = dma.done [#allocation3], 256
    $region53: #{encoder_layer.1} parent=1 // pred_fallthru
      _
    // Predicated region
    $region54: #{encoder_layer.1} parent=1 // pred_check
      _
    $region55: #{encoder_layer.1} parent=1 // pred_check_branch
      %926 = sbr.rel (0) target = $region57
    $region56: #{encoder_layer.1} parent=1 // pred_region
      %928 = dma.done [#allocation5], 1024
    $region57: #{encoder_layer.1} parent=1 // pred_fallthru
      _
    %929 = vsyncpa [#allocation3], 1
    %930 = vsyncpa [#allocation5], 1

</llo_original>
